<compile_context>
chip_gen: v7x
topology: tpu7x:2x2x1
jax: 0.10.0
libtpu: 0.0.40
codegen_flags: <defaults>
</compile_context>

<pallas_src>
import functools
from itertools import product

import jax
import jax.numpy as jnp
import numpy as np
from jax import lax
from jax.experimental import pallas as pl
from jax.experimental.pallas import tpu as pltpu

_OFFSETS = tuple(product((-1.0, 0.0, 1.0), repeat=3))


def _build_image_coeffs():
    """[32, 16] constant: row k gives d_rel(s_k) as a linear form over the 16 feature rows
    [G00,G11,G22,G01,G02,G12, 0,0, q0,q1,q2, 0,0,0,0,0]  (rows 27..31 are zero padding)."""
    c = np.zeros((32, 16), np.float32)
    for k, (s0, s1, s2) in enumerate(_OFFSETS):
        c[k, 0:6] = (s0 * s0, s1 * s1, s2 * s2,
                     2.0 * s0 * s1, 2.0 * s0 * s2, 2.0 * s1 * s2)
        c[k, 8:11] = (-2.0 * s0, -2.0 * s1, -2.0 * s2)
    return c


_IMAGE_COEFFS = _build_image_coeffs()


def _lane_valid(bn, blk, n_real):
    lane = lax.broadcasted_iota(jnp.int32, (1, bn), 1)
    return (lane + blk * bn) < n_real


def _delta_block(gram_ref, cmat_ref, x_ref, xt_ref, batch_ref):
    """Per-block fractional delta = x + best_offset - x_tilde  (and the in-kernel one-hot)."""
    bn = x_ref.shape[1]
    bpad = gram_ref.shape[1]

    # One-hot rebuilt in VMEM from the int32 batch-id row (padded atoms use id -1 -> all-zero col).
    onehot = (lax.broadcasted_iota(jnp.int32, (bpad, bn), 0)
              == batch_ref[...]).astype(jnp.float32)                       # [Bpad, bn]

    # Expand the per-structure Gram entries to per-atom columns with one MXU matmul.
    gcols = lax.dot_general(gram_ref[...], onehot,
                            dimension_numbers=(((1,), (0,)), ((), ())),
                            preferred_element_type=jnp.float32)            # [8, bn]

    dfrac = xt_ref[...] - x_ref[...]                                       # [3, bn]
    d0, d1, d2 = dfrac[0:1, :], dfrac[1:2, :], dfrac[2:3, :]
    g00, g11, g22 = gcols[0:1, :], gcols[1:2, :], gcols[2:3, :]
    g01, g02, g12 = gcols[3:4, :], gcols[4:5, :], gcols[5:6, :]

    # q = G @ dfrac  (per atom)
    q0 = g00 * d0 + g01 * d1 + g02 * d2
    q1 = g01 * d0 + g11 * d1 + g12 * d2
    q2 = g02 * d0 + g12 * d1 + g22 * d2

    feat = jnp.concatenate([gcols, q0, q1, q2,
                            jnp.zeros((5, bn), jnp.float32)], axis=0)      # [16, bn]

    # d_rel for all 27 images (+5 zero pad rows) in one MXU matmul.
    dmat = lax.dot_general(cmat_ref[...], feat,
                           dimension_numbers=(((1,), (0,)), ((), ())),
                           preferred_element_type=jnp.float32)             # [32, bn]

    def rowmin32(a):
        m8 = jnp.minimum(jnp.minimum(a[0:8, :], a[8:16, :]),
                         jnp.minimum(a[16:24, :], a[24:32, :]))            # [8, bn]
        return jnp.min(m8, axis=0, keepdims=True)                          # [1, bn]

    # Pad rows are 0 and the zero-offset image is always 0, so the winning index is in [0, 26]
    # and the min-over-candidate-indices reproduces torch's first-minimum tie-breaking.
    mrow = rowmin32(dmat)                                                  # [1, bn]
    ridx = lax.broadcasted_iota(jnp.int32, (32, bn), 0).astype(jnp.float32)
    bidx = rowmin32(jnp.where(dmat <= mrow, ridx, 127.0))                  # [1, bn]

    # Decode base-3 packed index -> offsets in {-1,0,1}   (exact, no division / floor).
    k0 = (bidx >= 9.0).astype(jnp.float32) + (bidx >= 18.0).astype(jnp.float32)
    rem = bidx - 9.0 * k0
    k1 = (rem >= 3.0).astype(jnp.float32) + (rem >= 6.0).astype(jnp.float32)
    k2 = rem - 3.0 * k1
    offs = jnp.concatenate([k0, k1, k2], axis=0) - 1.0                     # [3, bn]

    delta = offs - dfrac                                                   # = x + off - x_tilde
    return delta, onehot


def _nocenter_kernel(gram_ref, cmat_ref, x_ref, xt_ref, batch_ref, o_ref, acc_ref, *, n_real):
    i = pl.program_id(0)
    bn = x_ref.shape[1]

    @pl.when(i == 0)
    def _init():
        acc_ref[...] = jnp.zeros_like(acc_ref)

    delta, _ = _delta_block(gram_ref, cmat_ref, x_ref, xt_ref, batch_ref)
    valid = _lane_valid(bn, i, n_real)
    acc_ref[...] += jnp.where(valid, jnp.abs(delta), 0.0)

    @pl.when(i == pl.num_programs(0) - 1)
    def _finalize():
        rows = jnp.sum(acc_ref[...], axis=1, keepdims=True)                # [3, 1]
        tot = rows[0:1, :] + rows[1:2, :] + rows[2:3, :]                   # [1, 1]
        o_ref[...] = tot * (1.0 / (3.0 * n_real))


def _delta_sums_kernel(gram_ref, cmat_ref, x_ref, xt_ref, batch_ref, delta_ref, sums_ref):
    i = pl.program_id(0)

    @pl.when(i == 0)
    def _init():
        sums_ref[...] = jnp.zeros_like(sums_ref)

    delta, onehot = _delta_block(gram_ref, cmat_ref, x_ref, xt_ref, batch_ref)
    delta_ref[...] = delta
    # Fused per-structure scatter-sum of the three delta rows (single matmul).
    sums_ref[...] += lax.dot_general(delta, onehot,
                                     dimension_numbers=(((1,), (1,)), ((), ())),
                                     preferred_element_type=jnp.float32)   # [3, Bpad]


def _center_loss_kernel(cent_ref, delta_ref, batch_ref, o_ref, acc_ref, *, n_real):
    i = pl.program_id(0)
    bn = delta_ref.shape[1]
    bpad = cent_ref.shape[1]

    @pl.when(i == 0)
    def _init():
        acc_ref[...] = jnp.zeros_like(acc_ref)

    onehot = (lax.broadcasted_iota(jnp.int32, (bpad, bn), 0)
              == batch_ref[...]).astype(jnp.float32)
    cent_atoms = lax.dot_general(cent_ref[...], onehot,
                                 dimension_numbers=(((1,), (0,)), ((), ())),
                                 preferred_element_type=jnp.float32)       # [3, bn]
    valid = _lane_valid(bn, i, n_real)
    acc_ref[...] += jnp.where(valid, jnp.abs(delta_ref[...] - cent_atoms), 0.0)

    @pl.when(i == pl.num_programs(0) - 1)
    def _finalize():
        rows = jnp.sum(acc_ref[...], axis=1, keepdims=True)
        tot = rows[0:1, :] + rows[1:2, :] + rows[2:3, :]
        o_ref[...] = tot * (1.0 / (3.0 * n_real))


def _vmem_limit_bytes():
    """40 MiB limit on 64-MiB/TC parts (v7x), 64 MiB on 128-MiB parts (v5e/v6e)."""
    try:
        cap = pltpu.get_tpu_info().vmem_capacity_bytes
    except Exception:
        cap = 64 * 1024 * 1024
    return (64 << 20) if cap >= (96 << 20) else (40 << 20)


def _pick_block_atoms(bpad, vmem_limit, block_atoms):
    """Bpad-aware atom-block sizing: ~(96 + Bpad) f32 words per atom lane per block."""
    if block_atoms is None:
        budget = vmem_limit // 2
        block_atoms = budget // (4 * (96 + bpad))
    block_atoms = int(max(128, min(int(block_atoms), 16384)))
    return (block_atoms // 128) * 128


def min_distance_loss(cell, x, x_tilde, num_atoms, *, center: bool = True,
                      block_atoms: int | None = None):
    """Pallas implementation of MinDistanceLoss.forward (returns a scalar)."""
    cell = jnp.asarray(cell, jnp.float32)        # [B, 3, 3]
    x = jnp.asarray(x, jnp.float32)              # [N, 3]
    x_tilde = jnp.asarray(x_tilde, jnp.float32)  # [N, 3]
    num_atoms = jnp.asarray(num_atoms, jnp.int32)

    b = cell.shape[0]
    n = x.shape[0]

    # Host-side sanity check (silently mis-assigned atoms otherwise).
    try:
        total = int(jnp.sum(num_atoms))
    except Exception:
        total = None
    if total is not None and total != n:
        raise ValueError(f"sum(num_atoms)={total} does not match x.shape[0]={n}")

    bpad = max(8, ((b + 7) // 8) * 8)

    # Index plumbing (batch ids) stays in plain JAX — pure glue, O(N) int32.
    batch = jnp.repeat(jnp.arange(b, dtype=jnp.int32), num_atoms, total_repeat_length=n)

    # Tiny per-structure Gram table: G = cell^T @ cell, 6 unique entries, padded to [8, Bpad].
    gram = jnp.einsum('bai,baj->bij', cell, cell)
    gram_tab = jnp.stack([gram[:, 0, 0], gram[:, 1, 1], gram[:, 2, 2],
                          gram[:, 0, 1], gram[:, 0, 2], gram[:, 1, 2]], axis=0)   # [6, B]
    gram_tab = jnp.pad(gram_tab, ((0, 2), (0, bpad - b)))                          # [8, Bpad]
    cmat = jnp.asarray(_IMAGE_COEFFS)                                              # [32, 16]

    vmem_limit = _vmem_limit_bytes()
    bn = _pick_block_atoms(bpad, vmem_limit, block_atoms)
    npad0 = max(128, -(-n // 128) * 128)
    bn = min(bn, npad0)
    npad = -(-npad0 // bn) * bn
    nblocks = npad // bn
    padn = npad - n

    # Atoms-on-lanes layout; padded atoms get batch id -1 (no structure match).
    xT = jnp.pad(x.T, ((0, 0), (0, padn)))
    xtT = jnp.pad(x_tilde.T, ((0, 0), (0, padn)))
    batch_row = jnp.pad(batch[None, :], ((0, 0), (0, padn)), constant_values=-1)

    cparams = pltpu.CompilerParams(dimension_semantics=("arbitrary",),
                                   vmem_limit_bytes=vmem_limit)
    # TODO(synk): v7x dual-TensorCore split of the atom-block axis (core_parallel + per-core
    # partial accumulators) is not implemented; the grid runs sequentially on one TC.

    atom_specs = [
        pl.BlockSpec((8, bpad), lambda i: (0, 0)),    # Gram table (VMEM-resident)
        pl.BlockSpec((32, 16), lambda i: (0, 0)),     # constant image-coefficient matrix
        pl.BlockSpec((3, bn), lambda i: (0, i)),      # x (fractional)
        pl.BlockSpec((3, bn), lambda i: (0, i)),      # x_tilde (fractional)
        pl.BlockSpec((1, bn), lambda i: (0, i)),      # int32 batch ids
    ]

    if not center:
        out = pl.pallas_call(
            functools.partial(_nocenter_kernel, n_real=n),
            out_shape=jax.ShapeDtypeStruct((1, 1), jnp.float32),
            grid_spec=pltpu.PrefetchScalarGridSpec(
                num_scalar_prefetch=0, grid=(nblocks,),
                in_specs=atom_specs,
                out_specs=pl.BlockSpec((1, 1), lambda i: (0, 0)),
                scratch_shapes=[pltpu.VMEM((3, bn), jnp.float32)]),
            compiler_params=cparams,
        )(gram_tab, cmat, xT, xtT, batch_row)
        return out[0, 0]

    # Pass 1: per-atom fractional delta (cached to HBM) + per-structure delta sums.
    delta, sums = pl.pallas_call(
        _delta_sums_kernel,
        out_shape=(jax.ShapeDtypeStruct((3, npad), jnp.float32),
                   jax.ShapeDtypeStruct((3, bpad), jnp.float32)),
        grid_spec=pltpu.PrefetchScalarGridSpec(
            num_scalar_prefetch=0, grid=(nblocks,),
            in_specs=atom_specs,
            out_specs=[pl.BlockSpec((3, bn), lambda i: (0, i)),
                       pl.BlockSpec((3, bpad), lambda i: (0, 0))]),
        compiler_params=cparams,
    )(gram_tab, cmat, xT, xtT, batch_row)

    # Tiny host glue: centers = sums / num_atoms  (scatter_mean denominator, clamped at 1).
    counts = jnp.maximum(num_atoms.astype(jnp.float32), 1.0)
    counts = jnp.pad(counts, (0, bpad - b), constant_values=1.0)
    cent = sums / counts[None, :]                                          # [3, Bpad]

    # Pass 2: cheap masked |delta - center| reduction (no argmin recompute).
    out = pl.pallas_call(
        functools.partial(_center_loss_kernel, n_real=n),
        out_shape=jax.ShapeDtypeStruct((1, 1), jnp.float32),
        grid_spec=pltpu.PrefetchScalarGridSpec(
            num_scalar_prefetch=0, grid=(nblocks,),
            in_specs=[pl.BlockSpec((3, bpad), lambda i: (0, 0)),
                      pl.BlockSpec((3, bn), lambda i: (0, i)),
                      pl.BlockSpec((1, bn), lambda i: (0, i))],
            out_specs=pl.BlockSpec((1, 1), lambda i: (0, 0)),
            scratch_shapes=[pltpu.VMEM((3, bn), jnp.float32)]),
        compiler_params=cparams,
    )(cent, delta, batch_row)
    return out[0, 0]


def _min_distance_loss_ref(cell, x, x_tilde, num_atoms, *, center: bool = True):
    """Pure-JAX reference mirroring the PyTorch forward."""
    b = cell.shape[0]
    n = x.shape[0]
    offsets = jnp.array(list(_OFFSETS), dtype=jnp.float32)          # [27, 3]
    batch = jnp.repeat(jnp.arange(b), num_atoms, total_repeat_length=n)
    cb = cell[batch]
    euc_xt = jnp.einsum('iab,ib->ia', cb, x_tilde)
    euc_x = jnp.einsum('iab,ikb->ika', cb, x[:, None, :] + offsets[None, :, :])
    dist = jnp.linalg.norm(euc_xt[:, None, :] - euc_x, axis=2)
    best = offsets[jnp.argmin(dist, axis=1)]
    if center:
        delta = x + best - x_tilde
        sums = jax.ops.segment_sum(delta, batch, num_segments=b)
        counts = jax.ops.segment_sum(jnp.ones((n,), jnp.float32), batch, num_segments=b)
        cent = sums / jnp.maximum(counts, 1.0)[:, None]
        return jnp.mean(jnp.abs(x_tilde - (x + best - cent[batch])))
    return jnp.mean(jnp.abs(x_tilde - (x + best)))


if __name__ == "__main__":
    key = jax.random.PRNGKey(0)
    k1, k2, k3 = jax.random.split(key, 3)

    # Small case: 2 structures, 8 atoms total.
    b, n = 2, 8
    num_atoms = jnp.array([3, 5], dtype=jnp.int32)
    cell = 4.0 * jnp.eye(3, dtype=jnp.float32)[None] \
        + 0.1 * jax.random.normal(k1, (b, 3, 3), jnp.float32)
    x = jax.random.uniform(k2, (n, 3), dtype=jnp.float32)
    x_tilde = x + 0.1 * jax.random.normal(k3, (n, 3), jnp.float32)

    for ctr in (True, False):
        loss = jax.block_until_ready(
            min_distance_loss(cell, x, x_tilde, num_atoms, center=ctr))
        ref = _min_distance_loss_ref(cell, x, x_tilde, num_atoms, center=ctr)
        assert np.allclose(np.asarray(loss), np.asarray(ref),
                           rtol=1e-4, atol=1e-5), (ctr, loss, ref)

    # Multi-block case: exercises the tiled delta-cache + per-structure-sum path.
    k4, k5, k6 = jax.random.split(jax.random.PRNGKey(1), 3)
    b2, n2 = 3, 300
    num_atoms2 = jnp.array([100, 120, 80], dtype=jnp.int32)
    cell2 = 5.0 * jnp.eye(3, dtype=jnp.float32)[None] \
        + 0.1 * jax.random.normal(k4, (b2, 3, 3), jnp.float32)
    x2 = jax.random.uniform(k5, (n2, 3), dtype=jnp.float32)
    xt2 = x2 + 0.1 * jax.random.normal(k6, (n2, 3), jnp.float32)
    for ctr in (True, False):
        loss2 = jax.block_until_ready(
            min_distance_loss(cell2, x2, xt2, num_atoms2, center=ctr, block_atoms=128))
        ref2 = _min_distance_loss_ref(cell2, x2, xt2, num_atoms2, center=ctr)
        assert np.allclose(np.asarray(loss2), np.asarray(ref2),
                           rtol=1e-4, atol=1e-5), (ctr, loss2, ref2)

    print("KERNEL_OK")
</pallas_src>

<mosaic_0001>
module attributes {stable_mosaic.version = 11 : i64} {
  func.func @_delta_sums_kernel(%arg0: i32, %arg1: memref<8x8xf32, #tpu.memory_space<vmem>>, %arg2: memref<32x16xf32, #tpu.memory_space<vmem>>, %arg3: memref<3x128xf32, #tpu.memory_space<vmem>>, %arg4: memref<3x128xf32, #tpu.memory_space<vmem>>, %arg5: memref<1x128xi32, #tpu.memory_space<vmem>>, %arg6: memref<3x128xf32, #tpu.memory_space<vmem>>, %arg7: memref<3x8xf32, #tpu.memory_space<vmem>>) attributes {dimension_semantics = [#tpu.dimension_semantics<arbitrary>], iteration_bounds = array<i64: 1>, scalar_prefetch = 0 : i64, scratch_operands = 0 : i64, tpu.core_type = #tpu.core_type<tc>, window_params = [{pipeline_mode = #tpu.pipeline_mode<synchronous>, transform_indices = @transform_0, window_bounds = array<i64: 8, 8>}, {pipeline_mode = #tpu.pipeline_mode<synchronous>, transform_indices = @transform_1, window_bounds = array<i64: 32, 16>}, {transform_indices = @transform_2, window_bounds = array<i64: 3, 128>}, {transform_indices = @transform_3, window_bounds = array<i64: 3, 128>}, {transform_indices = @transform_4, window_bounds = array<i64: 1, 128>}, {transform_indices = @transform_5, window_bounds = array<i64: 3, 128>}, {pipeline_mode = #tpu.pipeline_mode<synchronous>, transform_indices = @transform_6, window_bounds = array<i64: 3, 8>}]} {
    %c0_i32 = arith.constant 0 : i32
    %0 = arith.cmpi eq, %arg0, %c0_i32 : i32
    %1 = arith.extui %0 : i1 to i32
    %c0_i32_0 = arith.constant 0 : i32
    %2 = arith.cmpi ne, %1, %c0_i32_0 : i32
    scf.if %2 {
      %cst_29 = arith.constant 0.000000e+00 : f32
      %99 = vector.broadcast %cst_29 : f32 to vector<3x8xf32>
      %c0_30 = arith.constant 0 : index
      %c0_31 = arith.constant 0 : index
      %100 = vector.load %arg7[%c0_30, %c0_31] : memref<3x8xf32, #tpu.memory_space<vmem>>, vector<3x8xf32>
      tpu.vector_store %arg7[%c0_30, %c0_31], %99 {strides = array<i32>} : memref<3x8xf32, #tpu.memory_space<vmem>>, vector<3x8xf32>,
    } else {
    }
    %3 = tpu.iota {dimensions = array<i32: 0>} : vector<8x128xi32>
    %c0 = arith.constant 0 : index
    %c0_1 = arith.constant 0 : index
    %4 = vector.load %arg5[%c0, %c0_1] : memref<1x128xi32, #tpu.memory_space<vmem>>, vector<1x128xi32>
    %5 = vector.broadcast %4 : vector<1x128xi32> to vector<8x128xi32>
    %6 = arith.cmpi eq, %3, %5 : vector<8x128xi32>
    %7 = arith.extui %6 : vector<8x128xi1> to vector<8x128xi32>
    %8 = arith.sitofp %7 : vector<8x128xi32> to vector<8x128xf32>
    %c0_2 = arith.constant 0 : index
    %c0_3 = arith.constant 0 : index
    %9 = vector.load %arg1[%c0_2, %c0_3] : memref<8x8xf32, #tpu.memory_space<vmem>>, vector<8x8xf32>
    %cst = arith.constant dense<0.000000e+00> : vector<8x128xf32>
    %10 = tpu.matmul %9, %8, %cst {dimension_numbers = #tpu.dot_dimension_numbers<[1], [0], [0], [1], [0, 0, 1, 1], [], []>} : vector<8x8xf32>, vector<8x128xf32>, vector<8x128xf32> -> vector<8x128xf32>
    %c0_4 = arith.constant 0 : index
    %c0_5 = arith.constant 0 : index
    %11 = vector.load %arg4[%c0_4, %c0_5] : memref<3x128xf32, #tpu.memory_space<vmem>>, vector<3x128xf32>
    %c0_6 = arith.constant 0 : index
    %c0_7 = arith.constant 0 : index
    %12 = vector.load %arg3[%c0_6, %c0_7] : memref<3x128xf32, #tpu.memory_space<vmem>>, vector<3x128xf32>
    %13 = arith.subf %11, %12 : vector<3x128xf32>
    %14 = vector.extract_strided_slice %13 {offsets = [0, 0], sizes = [1, 128], strides = [1, 1]} : vector<3x128xf32> to vector<1x128xf32>
    %15 = vector.extract_strided_slice %13 {offsets = [1, 0], sizes = [1, 128], strides = [1, 1]} : vector<3x128xf32> to vector<1x128xf32>
    %16 = vector.extract_strided_slice %13 {offsets = [2, 0], sizes = [1, 128], strides = [1, 1]} : vector<3x128xf32> to vector<1x128xf32>
    %17 = vector.extract_strided_slice %10 {offsets = [0, 0], sizes = [1, 128], strides = [1, 1]} : vector<8x128xf32> to vector<1x128xf32>
    %18 = vector.extract_strided_slice %10 {offsets = [1, 0], sizes = [1, 128], strides = [1, 1]} : vector<8x128xf32> to vector<1x128xf32>
    %19 = vector.extract_strided_slice %10 {offsets = [2, 0], sizes = [1, 128], strides = [1, 1]} : vector<8x128xf32> to vector<1x128xf32>
    %20 = vector.extract_strided_slice %10 {offsets = [3, 0], sizes = [1, 128], strides = [1, 1]} : vector<8x128xf32> to vector<1x128xf32>
    %21 = vector.extract_strided_slice %10 {offsets = [4, 0], sizes = [1, 128], strides = [1, 1]} : vector<8x128xf32> to vector<1x128xf32>
    %22 = vector.extract_strided_slice %10 {offsets = [5, 0], sizes = [1, 128], strides = [1, 1]} : vector<8x128xf32> to vector<1x128xf32>
    %23 = arith.mulf %17, %14 : vector<1x128xf32>
    %24 = arith.mulf %20, %15 : vector<1x128xf32>
    %25 = arith.addf %23, %24 : vector<1x128xf32>
    %26 = arith.mulf %21, %16 : vector<1x128xf32>
    %27 = arith.addf %25, %26 : vector<1x128xf32>
    %28 = arith.mulf %20, %14 : vector<1x128xf32>
    %29 = arith.mulf %18, %15 : vector<1x128xf32>
    %30 = arith.addf %28, %29 : vector<1x128xf32>
    %31 = arith.mulf %22, %16 : vector<1x128xf32>
    %32 = arith.addf %30, %31 : vector<1x128xf32>
    %33 = arith.mulf %21, %14 : vector<1x128xf32>
    %34 = arith.mulf %22, %15 : vector<1x128xf32>
    %35 = arith.addf %33, %34 : vector<1x128xf32>
    %36 = arith.mulf %19, %16 : vector<1x128xf32>
    %37 = arith.addf %35, %36 : vector<1x128xf32>
    %cst_8 = arith.constant 0.000000e+00 : f32
    %38 = vector.broadcast %cst_8 : f32 to vector<5x128xf32>
    %39 = tpu.concatenate %10, %27, %32, %37, %38 in 0 : vector<8x128xf32>, vector<1x128xf32>, vector<1x128xf32>, vector<1x128xf32>, vector<5x128xf32> -> vector<16x128xf32>
    %c0_9 = arith.constant 0 : index
    %c0_10 = arith.constant 0 : index
    %40 = vector.load %arg2[%c0_9, %c0_10] : memref<32x16xf32, #tpu.memory_space<vmem>>, vector<32x16xf32>
    %cst_11 = arith.constant dense<0.000000e+00> : vector<32x128xf32>
    %41 = tpu.matmul %40, %39, %cst_11 {dimension_numbers = #tpu.dot_dimension_numbers<[1], [0], [0], [1], [0, 0, 1, 1], [], []>} : vector<32x16xf32>, vector<16x128xf32>, vector<32x128xf32> -> vector<32x128xf32>
    %42 = vector.extract_strided_slice %41 {offsets = [0, 0], sizes = [8, 128], strides = [1, 1]} : vector<32x128xf32> to vector<8x128xf32>
    %43 = vector.extract_strided_slice %41 {offsets = [8, 0], sizes = [8, 128], strides = [1, 1]} : vector<32x128xf32> to vector<8x128xf32>
    %44 = arith.minimumf %42, %43 : vector<8x128xf32>
    %45 = vector.extract_strided_slice %41 {offsets = [16, 0], sizes = [8, 128], strides = [1, 1]} : vector<32x128xf32> to vector<8x128xf32>
    %46 = vector.extract_strided_slice %41 {offsets = [24, 0], sizes = [8, 128], strides = [1, 1]} : vector<32x128xf32> to vector<8x128xf32>
    %47 = arith.minimumf %45, %46 : vector<8x128xf32>
    %48 = arith.minimumf %44, %47 : vector<8x128xf32>
    %cst_12 = arith.constant dense<0x7F800000> : vector<128xf32>
    %49 = vector.multi_reduction <minimumf>, %48, %cst_12 [0] : vector<8x128xf32> to vector<128xf32>
    %50 = vector.shape_cast %49 : vector<128xf32> to vector<1x128xf32>
    %51 = tpu.iota {dimensions = array<i32: 0>} : vector<32x128xi32>
    %52 = arith.sitofp %51 : vector<32x128xi32> to vector<32x128xf32>
    %53 = vector.broadcast %50 : vector<1x128xf32> to vector<32x128xf32>
    %54 = arith.cmpf ole, %41, %53 : vector<32x128xf32>
    %cst_13 = arith.constant 1.270000e+02 : f32
    %55 = vector.broadcast %cst_13 : f32 to vector<32x128xf32>
    %56 = arith.select %54, %52, %55 : vector<32x128xi1>, vector<32x128xf32>
    %57 = vector.extract_strided_slice %56 {offsets = [0, 0], sizes = [8, 128], strides = [1, 1]} : vector<32x128xf32> to vector<8x128xf32>
    %58 = vector.extract_strided_slice %56 {offsets = [8, 0], sizes = [8, 128], strides = [1, 1]} : vector<32x128xf32> to vector<8x128xf32>
    %59 = arith.minimumf %57, %58 : vector<8x128xf32>
    %60 = vector.extract_strided_slice %56 {offsets = [16, 0], sizes = [8, 128], strides = [1, 1]} : vector<32x128xf32> to vector<8x128xf32>
    %61 = vector.extract_strided_slice %56 {offsets = [24, 0], sizes = [8, 128], strides = [1, 1]} : vector<32x128xf32> to vector<8x128xf32>
    %62 = arith.minimumf %60, %61 : vector<8x128xf32>
    %63 = arith.minimumf %59, %62 : vector<8x128xf32>
    %cst_14 = arith.constant dense<0x7F800000> : vector<128xf32>
    %64 = vector.multi_reduction <minimumf>, %63, %cst_14 [0] : vector<8x128xf32> to vector<128xf32>
    %65 = vector.shape_cast %64 : vector<128xf32> to vector<1x128xf32>
    %cst_15 = arith.constant 9.000000e+00 : f32
    %66 = vector.broadcast %cst_15 : f32 to vector<1x128xf32>
    %67 = arith.cmpf oge, %65, %66 : vector<1x128xf32>
    %68 = arith.extui %67 : vector<1x128xi1> to vector<1x128xi32>
    %69 = arith.sitofp %68 : vector<1x128xi32> to vector<1x128xf32>
    %cst_16 = arith.constant 1.800000e+01 : f32
    %70 = vector.broadcast %cst_16 : f32 to vector<1x128xf32>
    %71 = arith.cmpf oge, %65, %70 : vector<1x128xf32>
    %72 = arith.extui %71 : vector<1x128xi1> to vector<1x128xi32>
    %73 = arith.sitofp %72 : vector<1x128xi32> to vector<1x128xf32>
    %74 = arith.addf %69, %73 : vector<1x128xf32>
    %cst_17 = arith.constant 9.000000e+00 : f32
    %75 = vector.broadcast %cst_17 : f32 to vector<1x128xf32>
    %76 = arith.mulf %75, %74 : vector<1x128xf32>
    %77 = arith.subf %65, %76 : vector<1x128xf32>
    %cst_18 = arith.constant 3.000000e+00 : f32
    %78 = vector.broadcast %cst_18 : f32 to vector<1x128xf32>
    %79 = arith.cmpf oge, %77, %78 : vector<1x128xf32>
    %80 = arith.extui %79 : vector<1x128xi1> to vector<1x128xi32>
    %81 = arith.sitofp %80 : vector<1x128xi32> to vector<1x128xf32>
    %cst_19 = arith.constant 6.000000e+00 : f32
    %82 = vector.broadcast %cst_19 : f32 to vector<1x128xf32>
    %83 = arith.cmpf oge, %77, %82 : vector<1x128xf32>
    %84 = arith.extui %83 : vector<1x128xi1> to vector<1x128xi32>
    %85 = arith.sitofp %84 : vector<1x128xi32> to vector<1x128xf32>
    %86 = arith.addf %81, %85 : vector<1x128xf32>
    %cst_20 = arith.constant 3.000000e+00 : f32
    %87 = vector.broadcast %cst_20 : f32 to vector<1x128xf32>
    %88 = arith.mulf %87, %86 : vector<1x128xf32>
    %89 = arith.subf %77, %88 : vector<1x128xf32>
    %90 = tpu.concatenate %74, %86, %89 in 0 : vector<1x128xf32>, vector<1x128xf32>, vector<1x128xf32> -> vector<3x128xf32>
    %cst_21 = arith.constant 1.000000e+00 : f32
    %91 = vector.broadcast %cst_21 : f32 to vector<3x128xf32>
    %92 = arith.subf %90, %91 : vector<3x128xf32>
    %93 = arith.subf %92, %13 : vector<3x128xf32>
    %c0_22 = arith.constant 0 : index
    %c0_23 = arith.constant 0 : index
    %94 = vector.load %arg6[%c0_22, %c0_23] : memref<3x128xf32, #tpu.memory_space<vmem>>, vector<3x128xf32>
    tpu.vector_store %arg6[%c0_22, %c0_23], %93 {strides = array<i32>} : memref<3x128xf32, #tpu.memory_space<vmem>>, vector<3x128xf32>,
    %c0_24 = arith.constant 0 : index
    %c0_25 = arith.constant 0 : index
    %95 = vector.load %arg7[%c0_24, %c0_25] : memref<3x8xf32, #tpu.memory_space<vmem>>, vector<3x8xf32>
    %cst_26 = arith.constant dense<0.000000e+00> : vector<3x8xf32>
    %96 = tpu.matmul %93, %8, %cst_26 {dimension_numbers = #tpu.dot_dimension_numbers<[1], [1], [0], [0], [0, 0, 1, 0], [], []>} : vector<3x128xf32>, vector<8x128xf32>, vector<3x8xf32> -> vector<3x8xf32>
    %97 = arith.addf %95, %96 : vector<3x8xf32>
    %c0_27 = arith.constant 0 : index
    %c0_28 = arith.constant 0 : index
    %98 = vector.load %arg7[%c0_27, %c0_28] : memref<3x8xf32, #tpu.memory_space<vmem>>, vector<3x8xf32>
    tpu.vector_store %arg7[%c0_27, %c0_28], %97 {strides = array<i32>} : memref<3x8xf32, #tpu.memory_space<vmem>>, vector<3x8xf32>,
    return
  }
  func.func @transform_0(%arg0: i32) -> (i32, i32) {
    %c0_i32 = arith.constant 0 : i32
    %c0_i32_0 = arith.constant 0 : i32
    %c0_i32_1 = arith.constant 0 : i32
    return %c0_i32, %c0_i32_0 : i32, i32
  }
  func.func @transform_1(%arg0: i32) -> (i32, i32) {
    %c0_i32 = arith.constant 0 : i32
    %c0_i32_0 = arith.constant 0 : i32
    %c0_i32_1 = arith.constant 0 : i32
    return %c0_i32, %c0_i32_0 : i32, i32
  }
  func.func @transform_2(%arg0: i32) -> (i32, i32) {
    %c0_i32 = arith.constant 0 : i32
    %c0_i32_0 = arith.constant 0 : i32
    return %c0_i32, %arg0 : i32, i32
  }
  func.func @transform_3(%arg0: i32) -> (i32, i32) {
    %c0_i32 = arith.constant 0 : i32
    %c0_i32_0 = arith.constant 0 : i32
    return %c0_i32, %arg0 : i32, i32
  }
  func.func @transform_4(%arg0: i32) -> (i32, i32) {
    %c0_i32 = arith.constant 0 : i32
    %c0_i32_0 = arith.constant 0 : i32
    return %c0_i32, %arg0 : i32, i32
  }
  func.func @transform_5(%arg0: i32) -> (i32, i32) {
    %c0_i32 = arith.constant 0 : i32
    %c0_i32_0 = arith.constant 0 : i32
    return %c0_i32, %arg0 : i32, i32
  }
  func.func @transform_6(%arg0: i32) -> (i32, i32) {
    %c0_i32 = arith.constant 0 : i32
    %c0_i32_0 = arith.constant 0 : i32
    %c0_i32_1 = arith.constant 0 : i32
    return %c0_i32, %c0_i32_0 : i32, i32
  }
}

</mosaic_0001>

<llo_original>
// kernel: tpu_custom_call.1
$region0: #{tpu_custom_call.1}
  #allocation0 [shape = 'u32[]', space=smem, size = 0x4, offset = 0x4, fixed_abs, tag = 'smem constant byte address 0x4 - core index']
  #allocation1 [shape = 'u32[144,128]{1,0:T(1,128)}', space=vmem, size = 0x12000, scoped, tag = 'internal scratch']
  %s0 = inlined_call_operand.vmem [shape: f32[8,8], index: 0, kind: input, shape index: {}]
  %s1 = inlined_call_operand.vmem [shape: f32[32,16], index: 1, kind: input, shape index: {}]
  %s2 = inlined_call_operand.vmem [shape: f32[3,128], index: 2, kind: input, shape index: {}]
  %s3 = inlined_call_operand.vmem [shape: f32[3,128], index: 3, kind: input, shape index: {}]
  %s4 = inlined_call_operand.vmem [shape: s32[1,128], index: 4, kind: input, shape index: {}]
  %s5 = inlined_call_operand.hbm [shape: f32[3,128], index: 5, kind: output, shape index: {0}]
  %s6 = inlined_call_operand.hbm [shape: f32[3,8], index: 6, kind: output, shape index: {1}]
  %7 = xla_tuple %s5, %s6
  %s8 = sld [smem:[#allocation0]]
  $region42: #{tpu_custom_call.1} parent=0
    _
  %s10 = ssub.s32 1, %s8
  %s11 = scalar_select 0, %s10, %s8
  $region1: #{tpu_custom_call.1} parent=0
    #allocation2 [shape = 'u8[2048]{0}', space=vmem, size = 0x800, scoped, tag = 'output window, operand 0, single buffered']
    #allocation3 [shape = 's32[1]{0}', space=sflag, size = 0x4, scoped, tag = 'scoped memory for tpu_custom_call.1']
    #allocation4 [shape = 'u8[2048]{0}', space=vmem, size = 0x800, scoped, tag = 'output window, operand 1, single buffered']
    #allocation5 [shape = 's32[1]{0}', space=sflag, size = 0x4, scoped, tag = 'scoped memory for tpu_custom_call.1']
    %12 = vsyncpa [#allocation3], 0
    %13 = vsyncpa [#allocation5], 0
    // Predicated region
    $region2: #{tpu_custom_call.1} parent=1 // pred_check
      _
    $region3: #{tpu_custom_call.1} parent=1 // pred_check_branch
      %15 = sbr.rel (0) target = $region5
    $region4: #{tpu_custom_call.1} parent=1 // pred_region
      _
    $region5: #{tpu_custom_call.1} parent=1 // pred_fallthru
      _
    // Predicated region
    $region6: #{tpu_custom_call.1} parent=1 // pred_check
      _
    $region7: #{tpu_custom_call.1} parent=1 // pred_check_branch
      %17 = sbr.rel (0) target = $region9
    $region8: #{tpu_custom_call.1} parent=1 // pred_region
      _
    $region9: #{tpu_custom_call.1} parent=1 // pred_fallthru
      _
    // Predicated region
    $region10: #{tpu_custom_call.1} parent=1 // pred_check
      _
    $region11: #{tpu_custom_call.1} parent=1 // pred_check_branch
      %19 = sbr.rel (0) target = $region13
    $region12: #{tpu_custom_call.1} parent=1 // pred_region
      _
    $region13: #{tpu_custom_call.1} parent=1 // pred_fallthru
      _
    // Predicated region
    $region14: #{tpu_custom_call.1} parent=1 // pred_check
      _
    $region15: #{tpu_custom_call.1} parent=1 // pred_check_branch
      %21 = sbr.rel (0) target = $region17
    $region16: #{tpu_custom_call.1} parent=1 // pred_region
      _
    $region17: #{tpu_custom_call.1} parent=1 // pred_fallthru
      _
    // Predicated region
    $region18: #{tpu_custom_call.1} parent=1 // pred_check
      _
    $region19: #{tpu_custom_call.1} parent=1 // pred_check_branch
      %23 = sbr.rel (0) target = $region21
    $region20: #{tpu_custom_call.1} parent=1 // pred_region
      _
    $region21: #{tpu_custom_call.1} parent=1 // pred_fallthru
      _
    %p24 = scmp.eq.s32.totalorder 0, 0
    // Predicated region
    $region22: #{tpu_custom_call.1} parent=1 // pred_check
      %p25 = pneg %p24
    $region23: #{tpu_custom_call.1} parent=1 // pred_check_branch
      %27 = sbr.rel (%p25) target = $region25
    $region24: #{tpu_custom_call.1} parent=1 // pred_region
      %vm28 = vcmask 59392
      %29 = vst.msk [vmem:[#allocation4] sm:$0x7] %vm28, 0.0
    $region25: #{tpu_custom_call.1} parent=1 // pred_fallthru
      _
    %v30 = vlaneseq
    %v31 = vshrl.u32 %v30, 7
    %v32 = vld [vmem:[%s4] sm:$0x1]
    %v33 = vlaneseq
    %v34 = vshrl.u32 %v33, 7
    %v35 = vsub.s32 0, %v34
    %v36 = vrot.slane %v32, %v35
    %vm37 = vcmp.eq.s32.totalorder %v31, %v36
    %v38 = vsel %vm37, 1, 0
    %v39 = vcvt.s32.f32 %v38
    %v40 = vld [vmem:[%s0] sm:$0xff]
    %vm41 = vcmask 64512
    %v43 = vsel %vm41, %v40, 0
    %45 = vmatprep.subr.mxu0 0.0
    %46 = vmatpush1.msra.mxu0 %v39
    %47 = vmatprep.subr.mxu0 0.0
    %48 = vmatpush1.msra.mxu0 0.0
    %49 = vmatprep.subr.mxu0 0.0
    %50 = vmatpush1.msra.mxu0 0.0
    %51 = vmatprep.subr.mxu0 0.0
    %52 = vmatpush1.msra.mxu0 0.0
    %53 = vmatprep.subr.mxu0 0.0
    %54 = vmatpush1.msra.mxu0 0.0
    %55 = vmatprep.subr.mxu0 0.0
    %56 = vmatpush1.msra.mxu0 0.0
    %57 = vmatprep.subr.mxu0 0.0
    %58 = vmatpush1.msra.mxu0 0.0
    %59 = vmatprep.subr.mxu0 0.0
    %60 = vmatpush1.msra.mxu0 0.0
    %61 = vmatprep.subr.mxu0 0.0
    %62 = vmatpush1.msra.mxu0 0.0
    %63 = vmatprep.subr.mxu0 0.0
    %64 = vmatpush1.msra.mxu0 0.0
    %65 = vmatprep.subr.mxu0 0.0
    %66 = vmatpush1.msra.mxu0 0.0
    %67 = vmatprep.subr.mxu0 0.0
    %68 = vmatpush1.msra.mxu0 0.0
    %69 = vmatprep.subr.mxu0 0.0
    %70 = vmatpush1.msra.mxu0 0.0
    %71 = vmatprep.subr.mxu0 0.0
    %72 = vmatpush1.msra.mxu0 0.0
    %73 = vmatprep.subr.mxu0 0.0
    %74 = vmatpush1.msra.mxu0 0.0
    %75 = vmatprep.subr.mxu0 0.0
    %76 = vmatpush1.msra.mxu0 0.0
    %77 = vmatprep.subr.mxu0 0.0
    %78 = vmatpush1.msra.mxu0 0.0
    %79 = vmatprep.subr.mxu0 0.0
    %80 = vmatpush1.msra.mxu0 0.0
    %81 = vmatprep.subr.mxu0 0.0
    %82 = vmatpush1.msra.mxu0 0.0
    %83 = vmatprep.subr.mxu0 0.0
    %84 = vmatpush1.msra.mxu0 0.0
    %85 = vmatprep.subr.mxu0 0.0
    %86 = vmatpush1.msra.mxu0 0.0
    %87 = vmatprep.subr.mxu0 0.0
    %88 = vmatpush1.msra.mxu0 0.0
    %89 = vmatprep.subr.mxu0 0.0
    %90 = vmatpush1.msra.mxu0 0.0
    %91 = vmatprep.subr.mxu0 0.0
    %92 = vmatpush1.msra.mxu0 0.0
    %93 = vmatprep.subr.mxu0 0.0
    %94 = vmatpush1.msra.mxu0 0.0
    %95 = vmatprep.subr.mxu0 0.0
    %96 = vmatpush1.msra.mxu0 0.0
    %97 = vmatprep.subr.mxu0 0.0
    %98 = vmatpush1.msra.mxu0 0.0
    %99 = vmatprep.subr.mxu0 0.0
    %100 = vmatpush1.msra.mxu0 0.0
    %101 = vmatprep.subr.mxu0 0.0
    %102 = vmatpush1.msra.mxu0 0.0
    %103 = vmatprep.subr.mxu0 0.0
    %104 = vmatpush1.msra.mxu0 0.0
    %105 = vmatprep.subr.mxu0 0.0
    %106 = vmatpush1.msra.mxu0 0.0
    %107 = vmatprep.subr.mxu0 0.0
    %108 = vmatpush1.msra.mxu0 0.0
    %109 = vmatprep.mubr.f32.mxu0 0.0
    %110 = vmatmul.mubr.f32.gmra.mrb[0].mxu0 %v43
    %v111 = vpop.f32.mrb[0].mxu0
    %v112 = vadd.f32 0.0, %v111
    %v113 = vpop.f32.mrb[0].mxu0
    %114 = vdwg.mxu0
    %v115 = vld [vmem:[%s3] sm:$0x7]
    %v116 = vld [vmem:[%s2] sm:$0x7]
    %v117 = vsub.f32 %v115, %v116
    %v118 = vmul.f32 %v112, %v117
    %v120 = vrot.slane %v117, 6
    %v122 = vmul.f32 %v112, %v120
    %v124 = vrot.slane %v122, 3
    %v126 = vadd.f32 %v118, %v124
    %v127 = vrot.slane %v122, 4
    %v129 = vadd.f32 %v126, %v127
    %v130 = vrot.slane %v117, 5
    %v132 = vmul.f32 %v112, %v130
    %v134 = vrot.slane %v118, 6
    %v136 = vadd.f32 %v132, %v134
    %v138 = vrot.slane %v132, 2
    %v140 = vadd.f32 %v136, %v138
    %v141 = vrot.slane %v117, 4
    %v143 = vmul.f32 %v112, %v141
    %v145 = vrot.slane %v143, 1
    %v147 = vadd.f32 %v143, %v145
    %v148 = vadd.f32 %v147, %v134
    %v150 = vrot.slane %v140, 2
    %v153 = vrot.slane %v148, 2
    %vm155 = vcmask 1040384
    %v156 = vsel %vm155, %v129, %v150
    %vm157 = vcmask 1041408
    %v158 = vsel %vm157, %v156, %v153
    %vm159 = vcmask 1042432
    %v160 = vsel %vm159, %v158, 0.0
    %v161 = vld [vmem:[%s1] sm:$0xff]
    %v162 = vld [vmem:[%s1 + $0x8] sm:$0xff]
    %v163 = vld [vmem:[%s1 + $0x10] sm:$0xff]
    %v164 = vld [vmem:[%s1 + $0x18] sm:$0xff]
    %vm165 = vcmask 130048
    %v167 = vsel %vm165, %v161, 0
    %v170 = vsel %vm165, %v162, 0
    %v173 = vsel %vm165, %v163, 0
    %v176 = vsel %vm165, %v164, 0
    %178 = vmatprep.subr.mxu0 0.0
    %179 = vmatpush1.msra.mxu0 %v112
    %180 = vmatprep.subr.mxu0 0.0
    %181 = vmatpush1.msra.mxu0 %v160
    %182 = vmatprep.subr.mxu0 0.0
    %183 = vmatpush1.msra.mxu0 0.0
    %184 = vmatprep.subr.mxu0 0.0
    %185 = vmatpush1.msra.mxu0 0.0
    %186 = vmatprep.subr.mxu0 0.0
    %187 = vmatpush1.msra.mxu0 0.0
    %188 = vmatprep.subr.mxu0 0.0
    %189 = vmatpush1.msra.mxu0 0.0
    %190 = vmatprep.subr.mxu0 0.0
    %191 = vmatpush1.msra.mxu0 0.0
    %192 = vmatprep.subr.mxu0 0.0
    %193 = vmatpush1.msra.mxu0 0.0
    %194 = vmatprep.subr.mxu0 0.0
    %195 = vmatpush1.msra.mxu0 0.0
    %196 = vmatprep.subr.mxu0 0.0
    %197 = vmatpush1.msra.mxu0 0.0
    %198 = vmatprep.subr.mxu0 0.0
    %199 = vmatpush1.msra.mxu0 0.0
    %200 = vmatprep.subr.mxu0 0.0
    %201 = vmatpush1.msra.mxu0 0.0
    %202 = vmatprep.subr.mxu0 0.0
    %203 = vmatpush1.msra.mxu0 0.0
    %204 = vmatprep.subr.mxu0 0.0
    %205 = vmatpush1.msra.mxu0 0.0
    %206 = vmatprep.subr.mxu0 0.0
    %207 = vmatpush1.msra.mxu0 0.0
    %208 = vmatprep.subr.mxu0 0.0
    %209 = vmatpush1.msra.mxu0 0.0
    %210 = vmatprep.subr.mxu0 0.0
    %211 = vmatpush1.msra.mxu0 0.0
    %212 = vmatprep.subr.mxu0 0.0
    %213 = vmatpush1.msra.mxu0 0.0
    %214 = vmatprep.subr.mxu0 0.0
    %215 = vmatpush1.msra.mxu0 0.0
    %216 = vmatprep.subr.mxu0 0.0
    %217 = vmatpush1.msra.mxu0 0.0
    %218 = vmatprep.subr.mxu0 0.0
    %219 = vmatpush1.msra.mxu0 0.0
    %220 = vmatprep.subr.mxu0 0.0
    %221 = vmatpush1.msra.mxu0 0.0
    %222 = vmatprep.subr.mxu0 0.0
    %223 = vmatpush1.msra.mxu0 0.0
    %224 = vmatprep.subr.mxu0 0.0
    %225 = vmatpush1.msra.mxu0 0.0
    %226 = vmatprep.subr.mxu0 0.0
    %227 = vmatpush1.msra.mxu0 0.0
    %228 = vmatprep.subr.mxu0 0.0
    %229 = vmatpush1.msra.mxu0 0.0
    %230 = vmatprep.subr.mxu0 0.0
    %231 = vmatpush1.msra.mxu0 0.0
    %232 = vmatprep.subr.mxu0 0.0
    %233 = vmatpush1.msra.mxu0 0.0
    %234 = vmatprep.subr.mxu0 0.0
    %235 = vmatpush1.msra.mxu0 0.0
    %236 = vmatprep.subr.mxu0 0.0
    %237 = vmatpush1.msra.mxu0 0.0
    %238 = vmatprep.subr.mxu0 0.0
    %239 = vmatpush1.msra.mxu0 0.0
    %240 = vmatprep.subr.mxu0 0.0
    %241 = vmatpush1.msra.mxu0 0.0
    %242 = vmatprep.mubr.f32.mxu0 0.0
    %243 = vmatmul.mubr.f32.gmra.mrb[0].mxu0 %v167
    %v244 = vpop.f32.mrb[0].mxu0
    %v245 = vadd.f32 0.0, %v244
    %v246 = vpop.f32.mrb[0].mxu0
    %247 = vmatprep.mubr.f32.mxu0 0.0
    %248 = vmatmul.mubr.f32.gmra.mrb[0].mxu0 %v170
    %v249 = vpop.f32.mrb[0].mxu0
    %v250 = vadd.f32 0.0, %v249
    %v251 = vpop.f32.mrb[0].mxu0
    %252 = vmatprep.mubr.f32.mxu0 0.0
    %253 = vmatmul.mubr.f32.gmra.mrb[0].mxu0 %v173
    %v254 = vpop.f32.mrb[0].mxu0
    %v255 = vadd.f32 0.0, %v254
    %v256 = vpop.f32.mrb[0].mxu0
    %257 = vmatprep.mubr.f32.mxu0 0.0
    %258 = vmatmul.mubr.f32.gmra.mrb[0].mxu0 %v176
    %v259 = vpop.f32.mrb[0].mxu0
    %v260 = vadd.f32 0.0, %v259
    %v261 = vpop.f32.mrb[0].mxu0
    %262 = vdwg.mxu0
    %v263 = vmin.f32 %v245, %v250
    %v264 = vmin.f32 %v255, %v260
    %v265 = vmin.f32 %v263, %v264
    %v266 = vrot.slane %v265, 4
    %v267 = vmin.f32 %v265, %v266
    %v268 = vrot.slane %v267, 2
    %v269 = vmin.f32 %v267, %v268
    %v270 = vrot.slane %v269, 1
    %v271 = vmin.f32 %v269, %v270
    %v272 = vadd.s32 %v31, 8
    %v273 = vadd.s32 %v31, 16
    %v274 = vadd.s32 %v31, 24
    %v275 = vcvt.s32.f32 %v31
    %v276 = vcvt.s32.f32 %v272
    %v277 = vcvt.s32.f32 %v273
    %v278 = vcvt.s32.f32 %v274
    %vm279 = vcmp.le.f32.partialorder %v245, %v271
    %vm280 = vcmp.le.f32.partialorder %v250, %v271
    %vm281 = vcmp.le.f32.partialorder %v255, %v271
    %vm282 = vcmp.le.f32.partialorder %v260, %v271
    %v283 = vsel %vm279, %v275, 127.0
    %v284 = vsel %vm280, %v276, 127.0
    %v285 = vsel %vm281, %v277, 127.0
    %v286 = vsel %vm282, %v278, 127.0
    %v287 = vmin.f32 %v283, %v284
    %v288 = vmin.f32 %v285, %v286
    %v289 = vmin.f32 %v287, %v288
    %v290 = vrot.slane %v289, 4
    %v291 = vmin.f32 %v289, %v290
    %v292 = vrot.slane %v291, 2
    %v293 = vmin.f32 %v291, %v292
    %v294 = vrot.slane %v293, 1
    %v295 = vmin.f32 %v293, %v294
    %vm296 = vcmp.ge.f32.partialorder %v295, 9.0
    %v297 = vsel %vm296, 1, 0
    %v298 = vcvt.s32.f32 %v297
    %vm299 = vcmp.ge.f32.partialorder %v295, 18.0
    %v300 = vsel %vm299, 1, 0
    %v301 = vcvt.s32.f32 %v300
    %v302 = vadd.f32 %v298, %v301
    %v303 = vmul.f32 %v302, 9.0
    %v304 = vsub.f32 %v295, %v303
    %vm305 = vcmp.ge.f32.partialorder %v304, 3.0
    %v306 = vsel %vm305, 1, 0
    %v307 = vcvt.s32.f32 %v306
    %vm308 = vcmp.ge.f32.partialorder %v304, 6.0
    %v309 = vsel %vm308, 1, 0
    %v310 = vcvt.s32.f32 %v309
    %v311 = vadd.f32 %v307, %v310
    %v312 = vmul.f32 %v311, 3.0
    %v313 = vsub.f32 %v304, %v312
    %v314 = vsel %vm155, %v302, %v311
    %v315 = vsel %vm157, %v314, %v313
    %v316 = vsub.f32 %v315, 1.0
    %v317 = vsub.f32 %v316, %v117
    %318 = vst [vmem:[#allocation2] sm:$0x7] %v317
    %v319 = vld [vmem:[#allocation4] sm:$0x7]
    %320 = vmatprep.subr.mxu0 0.0
    %321 = vmatpush1.xpose.msra.mxu0 %v39
    %322 = vmatprep.subr.mxu0 0.0
    %323 = vmatpush1.xpose.msra.mxu0 0.0
    %324 = vmatprep.subr.mxu0 0.0
    %325 = vmatpush1.xpose.msra.mxu0 0.0
    %326 = vmatprep.subr.mxu0 0.0
    %327 = vmatpush1.xpose.msra.mxu0 0.0
    %328 = vmatprep.subr.mxu0 0.0
    %329 = vmatpush1.xpose.msra.mxu0 0.0
    %330 = vmatprep.subr.mxu0 0.0
    %331 = vmatpush1.xpose.msra.mxu0 0.0
    %332 = vmatprep.subr.mxu0 0.0
    %333 = vmatpush1.xpose.msra.mxu0 0.0
    %334 = vmatprep.subr.mxu0 0.0
    %335 = vmatpush1.xpose.msra.mxu0 0.0
    %336 = vmatprep.subr.mxu0 0.0
    %337 = vmatpush1.xpose.msra.mxu0 0.0
    %338 = vmatprep.subr.mxu0 0.0
    %339 = vmatpush1.xpose.msra.mxu0 0.0
    %340 = vmatprep.subr.mxu0 0.0
    %341 = vmatpush1.xpose.msra.mxu0 0.0
    %342 = vmatprep.subr.mxu0 0.0
    %343 = vmatpush1.xpose.msra.mxu0 0.0
    %344 = vmatprep.subr.mxu0 0.0
    %345 = vmatpush1.xpose.msra.mxu0 0.0
    %346 = vmatprep.subr.mxu0 0.0
    %347 = vmatpush1.xpose.msra.mxu0 0.0
    %348 = vmatprep.subr.mxu0 0.0
    %349 = vmatpush1.xpose.msra.mxu0 0.0
    %350 = vmatprep.subr.mxu0 0.0
    %351 = vmatpush1.xpose.msra.mxu0 0.0
    %352 = vmatprep.subr.mxu0 0.0
    %353 = vmatpush1.xpose.msra.mxu0 0.0
    %354 = vmatprep.subr.mxu0 0.0
    %355 = vmatpush1.xpose.msra.mxu0 0.0
    %356 = vmatprep.subr.mxu0 0.0
    %357 = vmatpush1.xpose.msra.mxu0 0.0
    %358 = vmatprep.subr.mxu0 0.0
    %359 = vmatpush1.xpose.msra.mxu0 0.0
    %360 = vmatprep.subr.mxu0 0.0
    %361 = vmatpush1.xpose.msra.mxu0 0.0
    %362 = vmatprep.subr.mxu0 0.0
    %363 = vmatpush1.xpose.msra.mxu0 0.0
    %364 = vmatprep.subr.mxu0 0.0
    %365 = vmatpush1.xpose.msra.mxu0 0.0
    %366 = vmatprep.subr.mxu0 0.0
    %367 = vmatpush1.xpose.msra.mxu0 0.0
    %368 = vmatprep.subr.mxu0 0.0
    %369 = vmatpush1.xpose.msra.mxu0 0.0
    %370 = vmatprep.subr.mxu0 0.0
    %371 = vmatpush1.xpose.msra.mxu0 0.0
    %372 = vmatprep.subr.mxu0 0.0
    %373 = vmatpush1.xpose.msra.mxu0 0.0
    %374 = vmatprep.subr.mxu0 0.0
    %375 = vmatpush1.xpose.msra.mxu0 0.0
    %376 = vmatprep.subr.mxu0 0.0
    %377 = vmatpush1.xpose.msra.mxu0 0.0
    %378 = vmatprep.subr.mxu0 0.0
    %379 = vmatpush1.xpose.msra.mxu0 0.0
    %380 = vmatprep.subr.mxu0 0.0
    %381 = vmatpush1.xpose.msra.mxu0 0.0
    %382 = vmatprep.subr.mxu0 0.0
    %383 = vmatpush1.xpose.msra.mxu0 0.0
    %384 = vmatprep.mubr.f32.mxu0 0.0
    %385 = vmatmul.mubr.f32.gmra.mrb[0].mxu0 %v317
    %v386 = vpop.f32.mrb[0].mxu0
    %v387 = vadd.f32 0.0, %v386
    %v388 = vpop.f32.mrb[0].mxu0
    %389 = vdwg.mxu0
    %v390 = vadd.f32 %v319, %v387
    %vm391 = vcmask 59392
    %392 = vst.msk [vmem:[#allocation4] sm:$0x7] %vm391, %v390
    // Predicated region
    $region26: #{tpu_custom_call.1} parent=1 // pred_check
      _
    $region27: #{tpu_custom_call.1} parent=1 // pred_check_branch
      %394 = sbr.rel (0) target = $region29
    $region28: #{tpu_custom_call.1} parent=1 // pred_region
      %s396 = ssub.s32 64, 64
      %397 = vsyncadd [#allocation3], %s396
      %s399 = sshll.u32 [#allocation2], 4
      %s400 = int_to_ptr.vmem [resolvable:$true] %s399
      %402 = dma.vmem_to_hbm [thread:$0]  %s400, 64, %s5, [#allocation3]
    $region29: #{tpu_custom_call.1} parent=1 // pred_fallthru
      _
    // Predicated region
    $region30: #{tpu_custom_call.1} parent=1 // pred_check
      _
    $region31: #{tpu_custom_call.1} parent=1 // pred_check_branch
      %404 = sbr.rel (0) target = $region33
    $region32: #{tpu_custom_call.1} parent=1 // pred_region
      %s406 = ssub.s32 64, 64
      %407 = vsyncadd [#allocation5], %s406
      %s409 = sshll.u32 [#allocation4], 4
      %s410 = int_to_ptr.vmem [resolvable:$true] %s409
      %412 = dma.vmem_to_hbm [thread:$0]  %s410, 64, %s6, [#allocation5]
    $region33: #{tpu_custom_call.1} parent=1 // pred_fallthru
      _
    // Predicated region
    $region34: #{tpu_custom_call.1} parent=1 // pred_check
      _
    $region35: #{tpu_custom_call.1} parent=1 // pred_check_branch
      %414 = sbr.rel (0) target = $region37
    $region36: #{tpu_custom_call.1} parent=1 // pred_region
      %415 = dma.done [#allocation3], 64
    $region37: #{tpu_custom_call.1} parent=1 // pred_fallthru
      _
    // Predicated region
    $region38: #{tpu_custom_call.1} parent=1 // pred_check
      _
    $region39: #{tpu_custom_call.1} parent=1 // pred_check_branch
      %417 = sbr.rel (0) target = $region41
    $region40: #{tpu_custom_call.1} parent=1 // pred_region
      %418 = dma.done [#allocation5], 64
    $region41: #{tpu_custom_call.1} parent=1 // pred_fallthru
      _
    %419 = vsyncpa [#allocation3], 1
    %420 = vsyncpa [#allocation5], 1

</llo_original>
